<compile_context>
chip_gen: v7x
topology: tpu7x:2x2x1
jax: 0.10.0
libtpu: 0.0.40
codegen_flags: <defaults>
</compile_context>

<pallas_src>
import jax
import jax.numpy as jnp
from jax import lax
from jax.experimental import pallas as pl
from jax.experimental.pallas import tpu as pltpu


def _i32(x):
    """uint32 hex literal -> equivalent two's-complement int32 Python int."""
    x &= 0xFFFFFFFF
    return x - (1 << 32) if x >= (1 << 31) else x


_M1 = _i32(0x7FEB352D)        # lowbias32 multipliers
_M2 = _i32(0x846CA68B)
_GOLDEN = _i32(0x9E3779B9)
_STREAM2 = _i32(0x85EBCA6B)   # decorrelation constant for the 2nd stream

_TWO_PI = 6.283185307179586
_INV_2POW24 = 1.0 / 16777216.0


def _lsr(x, n):
    """Logical right shift for int32 values (mask off the sign extension)."""
    return jnp.bitwise_and(x >> n, (1 << (32 - n)) - 1)


def _mix32(x):
    """lowbias32 avalanche hash; int32 two's-complement arithmetic wraps."""
    x = jnp.bitwise_xor(x, _lsr(x, 16))
    x = x * _M1
    x = jnp.bitwise_xor(x, _lsr(x, 15))
    x = x * _M2
    x = jnp.bitwise_xor(x, _lsr(x, 16))
    return x


def bottleneck_kernel(seed_ref, mu_ref, logvar_ref, z_ref):
    tb, d = mu_ref.shape

    # Counter-based RNG: global element index is distinct per grid step, so
    # every tile samples different eps even though the seed is shared.
    row0 = pl.program_id(0) * tb
    rows = lax.broadcasted_iota(jnp.int32, (tb, d), 0) + row0
    cols = lax.broadcasted_iota(jnp.int32, (tb, d), 1)
    idx = rows * d + cols

    seed = seed_ref[0]
    base = idx * _GOLDEN + seed
    h1 = _mix32(base)
    h2 = _mix32(jnp.bitwise_xor(base, _STREAM2))

    # 24-bit uniforms (int32 -> f32 convert only; no unsigned dtypes needed).
    u1 = (_lsr(h1, 8).astype(jnp.float32) + 1.0) * _INV_2POW24   # (0, 1]
    u2 = _lsr(h2, 8).astype(jnp.float32) * _INV_2POW24           # [0, 1)

    # Box-Muller -> eps ~ N(0, 1)
    eps = jnp.sqrt(-2.0 * jnp.log(u1)) * jnp.cos(_TWO_PI * u2)

    mu = mu_ref[...].astype(jnp.float32)
    logvar = logvar_ref[...].astype(jnp.float32)
    z = mu + jnp.exp(logvar * 0.5) * eps
    z_ref[...] = z.astype(z_ref.dtype)


def bottleneck(mu, logvar, seed=0):
    """z = mu + exp(logvar/2) * eps with eps ~ N(0,1), sampled in-kernel."""
    assert mu.shape == logvar.shape and mu.dtype == logvar.dtype
    orig_shape = mu.shape
    n = mu.size

    # Lane-dense working layout: 2-D slab whose last dim is the widest
    # multiple of 128 that divides the element count (avoids masked vst).
    last = None
    for cand in (2048, 1024, 512, 256, 128):
        if n % cand == 0:
            last = cand
            break
    if last is None:
        last = orig_shape[-1]   # fallback: still correct, possibly masked stores
    rows = n // last

    mu2 = mu.reshape(rows, last)
    lv2 = logvar.reshape(rows, last)

    # VMEM-aware batch tile: keep each per-array tile <= ~1 MiB so that
    # 2 buffers x 3 arrays stays far below the scoped-VMEM limit on every
    # generation (16 MiB v5e / 32 MiB v6e / 32-of-64 MiB v7x).
    itemsize = jnp.dtype(mu.dtype).itemsize
    if rows <= 8:
        tb = rows
    else:
        tb = min(rows, max(8, (1 << 20) // (last * itemsize)))
        tb = max(8, (tb // 8) * 8)

    grid = (pl.cdiv(rows, tb),)
    seed_arr = jnp.asarray([seed], dtype=jnp.int32)

    z2 = pl.pallas_call(
        bottleneck_kernel,
        out_shape=jax.ShapeDtypeStruct((rows, last), mu.dtype),
        grid_spec=pltpu.PrefetchScalarGridSpec(
            num_scalar_prefetch=1,          # seed lands in SMEM
            grid=grid,
            in_specs=[
                pl.BlockSpec((tb, last), lambda i, seed_ref: (i, 0)),
                pl.BlockSpec((tb, last), lambda i, seed_ref: (i, 0)),
            ],
            out_specs=pl.BlockSpec((tb, last), lambda i, seed_ref: (i, 0)),
        ),
        compiler_params=pltpu.CompilerParams(
            dimension_semantics=("parallel",),   # shard tiles across TCs (v7x)
        ),
    )(seed_arr, mu2, lv2)

    return z2.reshape(orig_shape)


if __name__ == "__main__":
    key = jax.random.PRNGKey(0)
    k_mu, k_lv = jax.random.split(key)

    B, D = 8, 32  # small VAE latent: (batch, latent_dim)
    mu = jax.random.normal(k_mu, (B, D), dtype=jnp.float32)
    logvar = 0.1 * jax.random.normal(k_lv, (B, D), dtype=jnp.float32)

    z = bottleneck(mu, logvar, seed=42)
    z = jax.block_until_ready(z)

    # light sanity checks: correct shape/dtype, finite values, noise applied
    assert z.shape == (B, D)
    assert z.dtype == jnp.float32
    assert bool(jnp.all(jnp.isfinite(z)))
    assert bool(jnp.any(jnp.abs(z - mu) > 0.0))

    print("KERNEL_OK")
</pallas_src>

<mosaic_0001>
module attributes {stable_mosaic.version = 11 : i64} {
  func.func @bottleneck_kernel(%arg0: i32, %arg1: memref<1xi32, #tpu.memory_space<smem>>, %arg2: memref<1x256xf32, #tpu.memory_space<vmem>>, %arg3: memref<1x256xf32, #tpu.memory_space<vmem>>, %arg4: memref<1x256xf32, #tpu.memory_space<vmem>>) attributes {dimension_semantics = [#tpu.dimension_semantics<parallel>], iteration_bounds = array<i64: 1>, scalar_prefetch = 1 : i64, scratch_operands = 0 : i64, tpu.core_type = #tpu.core_type<tc>, window_params = [{transform_indices = @transform_0, window_bounds = array<i64: 1, 256>}, {transform_indices = @transform_1, window_bounds = array<i64: 1, 256>}, {transform_indices = @transform_2, window_bounds = array<i64: 1, 256>}]} {
    %c1_i32 = arith.constant 1 : i32
    %0 = arith.muli %arg0, %c1_i32 : i32
    %1 = tpu.iota {dimensions = array<i32: 0>} : vector<1x256xi32>
    %2 = vector.broadcast %0 : i32 to vector<1x256xi32>
    %3 = arith.addi %1, %2 : vector<1x256xi32>
    %4 = tpu.iota {dimensions = array<i32: 1>} : vector<1x256xi32>
    %c256_i32 = arith.constant 256 : i32
    %5 = vector.broadcast %c256_i32 : i32 to vector<1x256xi32>
    %6 = arith.muli %3, %5 : vector<1x256xi32>
    %7 = arith.addi %6, %4 : vector<1x256xi32>
    %c0 = arith.constant 0 : index
    %8 = memref.load %arg1[%c0] : memref<1xi32, #tpu.memory_space<smem>>
    %c-1640531527_i32 = arith.constant -1640531527 : i32
    %9 = vector.broadcast %c-1640531527_i32 : i32 to vector<1x256xi32>
    %10 = arith.muli %7, %9 : vector<1x256xi32>
    %11 = vector.broadcast %8 : i32 to vector<1x256xi32>
    %12 = arith.addi %10, %11 : vector<1x256xi32>
    %c16_i32 = arith.constant 16 : i32
    %13 = vector.broadcast %c16_i32 : i32 to vector<1x256xi32>
    %14 = arith.shrsi %12, %13 : vector<1x256xi32>
    %c65535_i32 = arith.constant 65535 : i32
    %15 = vector.broadcast %c65535_i32 : i32 to vector<1x256xi32>
    %16 = arith.andi %14, %15 : vector<1x256xi32>
    %17 = arith.xori %12, %16 : vector<1x256xi32>
    %c2146121005_i32 = arith.constant 2146121005 : i32
    %18 = vector.broadcast %c2146121005_i32 : i32 to vector<1x256xi32>
    %19 = arith.muli %17, %18 : vector<1x256xi32>
    %c15_i32 = arith.constant 15 : i32
    %20 = vector.broadcast %c15_i32 : i32 to vector<1x256xi32>
    %21 = arith.shrsi %19, %20 : vector<1x256xi32>
    %c131071_i32 = arith.constant 131071 : i32
    %22 = vector.broadcast %c131071_i32 : i32 to vector<1x256xi32>
    %23 = arith.andi %21, %22 : vector<1x256xi32>
    %24 = arith.xori %19, %23 : vector<1x256xi32>
    %c-2073254261_i32 = arith.constant -2073254261 : i32
    %25 = vector.broadcast %c-2073254261_i32 : i32 to vector<1x256xi32>
    %26 = arith.muli %24, %25 : vector<1x256xi32>
    %c16_i32_0 = arith.constant 16 : i32
    %27 = vector.broadcast %c16_i32_0 : i32 to vector<1x256xi32>
    %28 = arith.shrsi %26, %27 : vector<1x256xi32>
    %c65535_i32_1 = arith.constant 65535 : i32
    %29 = vector.broadcast %c65535_i32_1 : i32 to vector<1x256xi32>
    %30 = arith.andi %28, %29 : vector<1x256xi32>
    %31 = arith.xori %26, %30 : vector<1x256xi32>
    %c-2048144789_i32 = arith.constant -2048144789 : i32
    %32 = vector.broadcast %c-2048144789_i32 : i32 to vector<1x256xi32>
    %33 = arith.xori %12, %32 : vector<1x256xi32>
    %c16_i32_2 = arith.constant 16 : i32
    %34 = vector.broadcast %c16_i32_2 : i32 to vector<1x256xi32>
    %35 = arith.shrsi %33, %34 : vector<1x256xi32>
    %c65535_i32_3 = arith.constant 65535 : i32
    %36 = vector.broadcast %c65535_i32_3 : i32 to vector<1x256xi32>
    %37 = arith.andi %35, %36 : vector<1x256xi32>
    %38 = arith.xori %33, %37 : vector<1x256xi32>
    %c2146121005_i32_4 = arith.constant 2146121005 : i32
    %39 = vector.broadcast %c2146121005_i32_4 : i32 to vector<1x256xi32>
    %40 = arith.muli %38, %39 : vector<1x256xi32>
    %c15_i32_5 = arith.constant 15 : i32
    %41 = vector.broadcast %c15_i32_5 : i32 to vector<1x256xi32>
    %42 = arith.shrsi %40, %41 : vector<1x256xi32>
    %c131071_i32_6 = arith.constant 131071 : i32
    %43 = vector.broadcast %c131071_i32_6 : i32 to vector<1x256xi32>
    %44 = arith.andi %42, %43 : vector<1x256xi32>
    %45 = arith.xori %40, %44 : vector<1x256xi32>
    %c-2073254261_i32_7 = arith.constant -2073254261 : i32
    %46 = vector.broadcast %c-2073254261_i32_7 : i32 to vector<1x256xi32>
    %47 = arith.muli %45, %46 : vector<1x256xi32>
    %c16_i32_8 = arith.constant 16 : i32
    %48 = vector.broadcast %c16_i32_8 : i32 to vector<1x256xi32>
    %49 = arith.shrsi %47, %48 : vector<1x256xi32>
    %c65535_i32_9 = arith.constant 65535 : i32
    %50 = vector.broadcast %c65535_i32_9 : i32 to vector<1x256xi32>
    %51 = arith.andi %49, %50 : vector<1x256xi32>
    %52 = arith.xori %47, %51 : vector<1x256xi32>
    %c8_i32 = arith.constant 8 : i32
    %53 = vector.broadcast %c8_i32 : i32 to vector<1x256xi32>
    %54 = arith.shrsi %31, %53 : vector<1x256xi32>
    %c16777215_i32 = arith.constant 16777215 : i32
    %55 = vector.broadcast %c16777215_i32 : i32 to vector<1x256xi32>
    %56 = arith.andi %54, %55 : vector<1x256xi32>
    %57 = arith.sitofp %56 : vector<1x256xi32> to vector<1x256xf32>
    %cst = arith.constant 1.000000e+00 : f32
    %58 = vector.broadcast %cst : f32 to vector<1x256xf32>
    %59 = arith.addf %57, %58 : vector<1x256xf32>
    %cst_10 = arith.constant 5.96046448E-8 : f32
    %60 = vector.broadcast %cst_10 : f32 to vector<1x256xf32>
    %61 = arith.mulf %59, %60 : vector<1x256xf32>
    %c8_i32_11 = arith.constant 8 : i32
    %62 = vector.broadcast %c8_i32_11 : i32 to vector<1x256xi32>
    %63 = arith.shrsi %52, %62 : vector<1x256xi32>
    %c16777215_i32_12 = arith.constant 16777215 : i32
    %64 = vector.broadcast %c16777215_i32_12 : i32 to vector<1x256xi32>
    %65 = arith.andi %63, %64 : vector<1x256xi32>
    %66 = arith.sitofp %65 : vector<1x256xi32> to vector<1x256xf32>
    %cst_13 = arith.constant 5.96046448E-8 : f32
    %67 = vector.broadcast %cst_13 : f32 to vector<1x256xf32>
    %68 = arith.mulf %66, %67 : vector<1x256xf32>
    %69 = math.log %61 : vector<1x256xf32>
    %cst_14 = arith.constant -2.000000e+00 : f32
    %70 = vector.broadcast %cst_14 : f32 to vector<1x256xf32>
    %71 = arith.mulf %70, %69 : vector<1x256xf32>
    %72 = math.sqrt %71 : vector<1x256xf32>
    %cst_15 = arith.constant 6.28318548 : f32
    %73 = vector.broadcast %cst_15 : f32 to vector<1x256xf32>
    %74 = arith.mulf %73, %68 : vector<1x256xf32>
    %75 = math.cos %74 : vector<1x256xf32>
    %76 = arith.mulf %72, %75 : vector<1x256xf32>
    %c0_16 = arith.constant 0 : index
    %c0_17 = arith.constant 0 : index
    %77 = vector.load %arg2[%c0_16, %c0_17] : memref<1x256xf32, #tpu.memory_space<vmem>>, vector<1x256xf32>
    %c0_18 = arith.constant 0 : index
    %c0_19 = arith.constant 0 : index
    %78 = vector.load %arg3[%c0_18, %c0_19] : memref<1x256xf32, #tpu.memory_space<vmem>>, vector<1x256xf32>
    %cst_20 = arith.constant 5.000000e-01 : f32
    %79 = vector.broadcast %cst_20 : f32 to vector<1x256xf32>
    %80 = arith.mulf %78, %79 : vector<1x256xf32>
    %81 = math.exp %80 : vector<1x256xf32>
    %82 = arith.mulf %81, %76 : vector<1x256xf32>
    %83 = arith.addf %77, %82 : vector<1x256xf32>
    %c0_21 = arith.constant 0 : index
    %c0_22 = arith.constant 0 : index
    %84 = vector.load %arg4[%c0_21, %c0_22] : memref<1x256xf32, #tpu.memory_space<vmem>>, vector<1x256xf32>
    tpu.vector_store %arg4[%c0_21, %c0_22], %83 {strides = array<i32>} : memref<1x256xf32, #tpu.memory_space<vmem>>, vector<1x256xf32>,
    return
  }
  func.func @transform_0(%arg0: i32, %arg1: memref<1xi32, #tpu.memory_space<smem>>) -> (i32, i32) {
    %c0_i32 = arith.constant 0 : i32
    %c0_i32_0 = arith.constant 0 : i32
    return %arg0, %c0_i32 : i32, i32
  }
  func.func @transform_1(%arg0: i32, %arg1: memref<1xi32, #tpu.memory_space<smem>>) -> (i32, i32) {
    %c0_i32 = arith.constant 0 : i32
    %c0_i32_0 = arith.constant 0 : i32
    return %arg0, %c0_i32 : i32, i32
  }
  func.func @transform_2(%arg0: i32, %arg1: memref<1xi32, #tpu.memory_space<smem>>) -> (i32, i32) {
    %c0_i32 = arith.constant 0 : i32
    %c0_i32_0 = arith.constant 0 : i32
    return %arg0, %c0_i32 : i32, i32
  }
}

</mosaic_0001>

<llo_original>
// kernel: tpu_custom_call.1
$region0: #{tpu_custom_call.1}
  #allocation0 [shape = 'u32[]', space=smem, size = 0x4, offset = 0x4, fixed_abs, tag = 'smem constant byte address 0x4 - core index']
  #allocation1 [shape = 'u32[144,128]{1,0:T(1,128)}', space=vmem, size = 0x12000, scoped, tag = 'internal scratch']
  #allocation2 [shape = 's32[1]{0}', space=sflag, size = 0x4, scoped, tag = 'scoped memory for tpu_custom_call.1']
  #allocation3 [shape = 's32[1]{0:T(128)S(6)}', space=smem, size = 0x200, scoped, tag = 'prefetched SMEM operand 0']
  %s0 = inlined_call_operand.<no memory space> [shape: s32[1], index: 0, kind: input, shape index: {}]
  %s1 = inlined_call_operand.vmem [shape: f32[1,256], index: 1, kind: input, shape index: {}]
  %s2 = inlined_call_operand.vmem [shape: f32[1,256], index: 2, kind: input, shape index: {}]
  %s3 = inlined_call_operand.hbm [shape: f32[1,256], index: 3, kind: output, shape index: {}]
  %s4 = sld [smem:[#allocation0]]
  $region18: #{tpu_custom_call.1} parent=0
    _
  %s6 = ssub.s32 1, %s4
  %s7 = scalar_select 0, %s6, %s4
  %8 = sst [smem:[#allocation3]] %s0
  $region1: #{tpu_custom_call.1} parent=0
    #allocation4 [shape = 'u8[1024]{0}', space=vmem, size = 0x400, scoped, tag = 'output window, operand 0, single buffered']
    #allocation5 [shape = 's32[1]{0}', space=sflag, size = 0x4, scoped, tag = 'scoped memory for tpu_custom_call.1']
    %9 = vsyncpa [#allocation5], 0
    // Predicated region
    $region2: #{tpu_custom_call.1} parent=1 // pred_check
      _
    $region3: #{tpu_custom_call.1} parent=1 // pred_check_branch
      %11 = sbr.rel (0) target = $region5
    $region4: #{tpu_custom_call.1} parent=1 // pred_region
      _
    $region5: #{tpu_custom_call.1} parent=1 // pred_fallthru
      _
    // Predicated region
    $region6: #{tpu_custom_call.1} parent=1 // pred_check
      _
    $region7: #{tpu_custom_call.1} parent=1 // pred_check_branch
      %13 = sbr.rel (0) target = $region9
    $region8: #{tpu_custom_call.1} parent=1 // pred_region
      _
    $region9: #{tpu_custom_call.1} parent=1 // pred_fallthru
      _
    %v14 = vlaneseq
    %v15 = vshrl.u32 %v14, 7
    %v16 = vstv 0
    %v17 = vadd.s32 %v15, %v16
    %v18 = vlaneseq
    %v19 = vand.u32 %v18, 127
    %v20 = vadd.s32 %v19, 128
    %v21 = vmul.u32 %v17, 256
    %v22 = vadd.s32 %v21, %v19
    %v23 = vadd.s32 %v21, %v20
    %s24 = sld [smem:[#allocation3]]
    %v25 = vmul.u32 %v22, 2654435769
    %v26 = vmul.u32 %v23, 2654435769
    %v27 = vstv %s24
    %v28 = vadd.s32 %v25, %v27
    %v29 = vadd.s32 %v26, %v27
    %v30 = vshra.s32 %v28, 16
    %v31 = vshra.s32 %v29, 16
    %v32 = vand.u32 %v30, 65535
    %v33 = vand.u32 %v31, 65535
    %v34 = vxor.u32 %v28, %v32
    %v35 = vxor.u32 %v29, %v33
    %v36 = vmul.u32 %v34, 2146121005
    %v37 = vmul.u32 %v35, 2146121005
    %v38 = vshra.s32 %v36, 15
    %v39 = vshra.s32 %v37, 15
    %v40 = vand.u32 %v38, 131071
    %v41 = vand.u32 %v39, 131071
    %v42 = vxor.u32 %v36, %v40
    %v43 = vxor.u32 %v37, %v41
    %v44 = vmul.u32 %v42, 2221713035
    %v45 = vmul.u32 %v43, 2221713035
    %v46 = vshra.s32 %v44, 16
    %v47 = vshra.s32 %v45, 16
    %v48 = vand.u32 %v46, 65535
    %v49 = vand.u32 %v47, 65535
    %v50 = vxor.u32 %v44, %v48
    %v51 = vxor.u32 %v45, %v49
    %v52 = vxor.u32 %v28, 2246822507
    %v53 = vxor.u32 %v29, 2246822507
    %v54 = vshra.s32 %v52, 16
    %v55 = vshra.s32 %v53, 16
    %v56 = vand.u32 %v54, 65535
    %v57 = vand.u32 %v55, 65535
    %v58 = vxor.u32 %v52, %v56
    %v59 = vxor.u32 %v53, %v57
    %v60 = vmul.u32 %v58, 2146121005
    %v61 = vmul.u32 %v59, 2146121005
    %v62 = vshra.s32 %v60, 15
    %v63 = vshra.s32 %v61, 15
    %v64 = vand.u32 %v62, 131071
    %v65 = vand.u32 %v63, 131071
    %v66 = vxor.u32 %v60, %v64
    %v67 = vxor.u32 %v61, %v65
    %v68 = vmul.u32 %v66, 2221713035
    %v69 = vmul.u32 %v67, 2221713035
    %v70 = vshra.s32 %v68, 16
    %v71 = vshra.s32 %v69, 16
    %v72 = vand.u32 %v70, 65535
    %v73 = vand.u32 %v71, 65535
    %v74 = vxor.u32 %v68, %v72
    %v75 = vxor.u32 %v69, %v73
    %v76 = vshra.s32 %v50, 8
    %v77 = vshra.s32 %v51, 8
    %v78 = vand.u32 %v76, 16777215
    %v79 = vand.u32 %v77, 16777215
    %v80 = vcvt.s32.f32 %v78
    %v81 = vcvt.s32.f32 %v79
    %v82 = vadd.f32 %v80, 1.0
    %v83 = vadd.f32 %v81, 1.0
    %v84 = vmul.f32 %v82, 5.9604645e-08
    %v85 = vmul.f32 %v83, 5.9604645e-08
    %v86 = vshra.s32 %v74, 8
    %v87 = vshra.s32 %v75, 8
    %v88 = vand.u32 %v86, 16777215
    %v89 = vand.u32 %v87, 16777215
    %v90 = vcvt.s32.f32 %v88
    %v91 = vcvt.s32.f32 %v89
    %v92 = vmul.f32 %v90, 5.9604645e-08
    %v93 = vmul.f32 %v91, 5.9604645e-08
    %v94 = vlog2.pop %v84
    %v95 = vmul.f32 %v94, 0.6931472
    %v96 = vlog2.pop %v85
    %v97 = vmul.f32 %v96, 0.6931472
    %v98 = vmul.f32 %v95, -2.0
    %v99 = vmul.f32 %v97, -2.0
    %v100 = vrsqrt.pop %v98
    %v101 = vmul.f32 %v98, %v100
    %vm102 = vcmp.eq.f32.partialorder %v98, inf
    %v103 = vsel %vm102, %v98, %v101
    %vm104 = vcmp.eq.f32.partialorder %v98, 0.0
    %v105 = vand.u32 %v98, 2147483648
    %v106 = vsel %vm104, %v105, %v103
    %v107 = vrsqrt.pop %v99
    %v108 = vmul.f32 %v99, %v107
    %vm109 = vcmp.eq.f32.partialorder %v99, inf
    %v110 = vsel %vm109, %v99, %v108
    %vm111 = vcmp.eq.f32.partialorder %v99, 0.0
    %v112 = vand.u32 %v99, 2147483648
    %v113 = vsel %vm111, %v112, %v110
    %v114 = vmul.f32 %v92, 6.2831855
    %v115 = vmul.f32 %v93, 6.2831855
    %v116 = vand.u32 2147483647, %v114
    %vm117 = vcmp.le.f32.partialorder %v116, 0.7853982
    %vm118 = vcmp.lt.s32.totalorder %v114, 0
    %v119 = vand.u32 %v114, 2139095040
    %v120 = vshrl.u32 %v119, 23
    %v121 = vsub.s32 %v120, 127
    %v122 = vand.u32 2147483647, %v114
    %v123 = vand.u32 %v122, 8388607
    %v124 = vor.u32 %v123, 8388608
    %v125 = vsub.s32 0, %v124
    %v126 = vadd.s32 %v121, 1
    %vm127 = vcmp.gt.s32.totalorder %v126, 0
    %v128 = vsel %vm127, %v126, 0
    %v129 = vshrl.u32 %v128, 5
    %v130 = vand.u32 %v128, 31
    %v131 = vsub.s32 32, %v130
    %v132 = vshrl.u32 683565275, %v131
    %v133 = vshll.u32 683565275, %v130
    %v134 = vshrl.u32 2475754826, %v131
    %v135 = vor.u32 %v133, %v134
    %v136 = vshll.u32 2475754826, %v130
    %v137 = vshrl.u32 2131351028, %v131
    %v138 = vor.u32 %v136, %v137
    %v139 = vshll.u32 2131351028, %v130
    %v140 = vshrl.u32 2102212464, %v131
    %v141 = vor.u32 %v139, %v140
    %v142 = vshll.u32 2102212464, %v130
    %v143 = vshrl.u32 920167782, %v131
    %v144 = vor.u32 %v142, %v143
    %v145 = vshll.u32 920167782, %v130
    %v146 = vshrl.u32 1326507024, %v131
    %v147 = vor.u32 %v145, %v146
    %vm148 = vcmp.lt.s32.totalorder %v129, 1
    %vm149 = vcmp.lt.s32.totalorder %v129, 2
    %vm150 = vcmp.lt.s32.totalorder %v129, 3
    %vm151 = vcmp.lt.s32.totalorder %v129, 4
    %v152 = vsel %vm148, %v132, %v135
    %v153 = vsel %vm151, %v141, 2102212464
    %v154 = vsel %vm150, %v138, %v153
    %v155 = vsel %vm149, %v152, %v154
    %v156 = vsel %vm148, %v135, %v138
    %v157 = vsel %vm151, %v144, 920167782
    %v158 = vsel %vm150, %v141, %v157
    %v159 = vsel %vm149, %v156, %v158
    %v160 = vsel %vm148, %v138, %v141
    %v161 = vsel %vm151, %v147, 1326507024
    %v162 = vsel %vm150, %v144, %v161
    %v163 = vsel %vm149, %v160, %v162
    %v164 = vshll.u32 %v124, 8
    %v165 = vmul.u32.u64.compose %v164, %v163
    %v166 = vextract.low.u32 %v165
    %v167 = vextract.high.u32 %v165
    %v168 = vmul.u32.u64.compose %v164, %v159
    %v169 = vextract.low.u32 %v168
    %v170 = vextract.high.u32 %v168
    %v171 = vmul.u32 %v164, %v155
    %v172 = vadd.s32 %v167, %v169
    %vm173 = vc.u32 %v167, %v169
    %v174 = vadd.s32 %v170, 1
    %v175 = vsel %vm173, %v174, %v170
    %v176 = vadd.s32 %v171, %v175
    %v177 = vadd.s32 %v176, 536870912
    %v178 = vshrl.u32 %v177, 30
    %v179 = vshll.u32 %v178, 30
    %v180 = vsub.s32 %v176, %v179
    %vm181 = vcmp.lt.s32.totalorder %v180, 0
    %v182 = vsub.s32 0, %v180
    %v183 = vsel %vm181, %v182, %v180
    %v184 = vclz %v183
    %v185 = vsub.s32 %v184, 2
    %vm186 = vcmp.gt.s32.totalorder 0, %v185
    %v187 = vsel %vm186, 0, %v185
    %v188 = vsub.s32 32, %v187
    %v189 = vshll.u32 %v180, %v187
    %v190 = vshrl.u32 %v172, %v188
    %v191 = vor.u32 %v189, %v190
    %v192 = vsub.s32 4294967266, %v187
    %v193 = vadd.s32 %v192, 127
    %v194 = vshll.u32 %v193, 23
    %v195 = vor.u32 4788187, %v194
    %v196 = vand.u32 2147483647, %v195
    %v198 = vcvt.s32.f32 %v191
    %v199 = vmul.f32 %v198, %v196
    %v200 = vxor.u32 %v199, 2147483648
    %v201 = vsel %vm118, %v200, %v199
    %v202 = vsub.s32 4, %v178
    %v203 = vsel %vm118, %v202, %v178
    %v204 = vsel %vm117, %v114, %v201
    %v205 = vsel %vm117, 0, %v203
    %v206 = vcosq.f32.pop %v204
    %v207 = vsinq.f32.pop %v204
    %vm208 = vweird.f32 %v114
    %v209 = vand.u32 %v205, 3
    %vm210 = vcmp.lt.s32.totalorder %v209, 2
    %vm211 = vcmp.eq.s32.totalorder %v209, 0
    %v212 = vxor.u32 %v207, 2147483648
    %v213 = vsel %vm211, %v206, %v212
    %vm214 = vcmp.eq.s32.totalorder %v209, 2
    %v215 = vxor.u32 %v206, 2147483648
    %v216 = vsel %vm214, %v215, %v207
    %v217 = vsel %vm210, %v213, %v216
    %v218 = vsel %vm208, nan, %v217
    %v219 = vand.u32 2147483647, %v115
    %vm220 = vcmp.le.f32.partialorder %v219, 0.7853982
    %vm221 = vcmp.lt.s32.totalorder %v115, 0
    %v222 = vand.u32 %v115, 2139095040
    %v223 = vshrl.u32 %v222, 23
    %v224 = vsub.s32 %v223, 127
    %v225 = vand.u32 2147483647, %v115
    %v226 = vand.u32 %v225, 8388607
    %v227 = vor.u32 %v226, 8388608
    %v228 = vsub.s32 0, %v227
    %v229 = vadd.s32 %v224, 1
    %vm230 = vcmp.gt.s32.totalorder %v229, 0
    %v231 = vsel %vm230, %v229, 0
    %v232 = vshrl.u32 %v231, 5
    %v233 = vand.u32 %v231, 31
    %v234 = vsub.s32 32, %v233
    %v235 = vshrl.u32 683565275, %v234
    %v236 = vshll.u32 683565275, %v233
    %v237 = vshrl.u32 2475754826, %v234
    %v238 = vor.u32 %v236, %v237
    %v239 = vshll.u32 2475754826, %v233
    %v240 = vshrl.u32 2131351028, %v234
    %v241 = vor.u32 %v239, %v240
    %v242 = vshll.u32 2131351028, %v233
    %v243 = vshrl.u32 2102212464, %v234
    %v244 = vor.u32 %v242, %v243
    %v245 = vshll.u32 2102212464, %v233
    %v246 = vshrl.u32 920167782, %v234
    %v247 = vor.u32 %v245, %v246
    %v248 = vshll.u32 920167782, %v233
    %v249 = vshrl.u32 1326507024, %v234
    %v250 = vor.u32 %v248, %v249
    %vm251 = vcmp.lt.s32.totalorder %v232, 1
    %vm252 = vcmp.lt.s32.totalorder %v232, 2
    %vm253 = vcmp.lt.s32.totalorder %v232, 3
    %vm254 = vcmp.lt.s32.totalorder %v232, 4
    %v255 = vsel %vm251, %v235, %v238
    %v256 = vsel %vm254, %v244, 2102212464
    %v257 = vsel %vm253, %v241, %v256
    %v258 = vsel %vm252, %v255, %v257
    %v259 = vsel %vm251, %v238, %v241
    %v260 = vsel %vm254, %v247, 920167782
    %v261 = vsel %vm253, %v244, %v260
    %v262 = vsel %vm252, %v259, %v261
    %v263 = vsel %vm251, %v241, %v244
    %v264 = vsel %vm254, %v250, 1326507024
    %v265 = vsel %vm253, %v247, %v264
    %v266 = vsel %vm252, %v263, %v265
    %v267 = vshll.u32 %v227, 8
    %v268 = vmul.u32.u64.compose %v267, %v266
    %v269 = vextract.low.u32 %v268
    %v270 = vextract.high.u32 %v268
    %v271 = vmul.u32.u64.compose %v267, %v262
    %v272 = vextract.low.u32 %v271
    %v273 = vextract.high.u32 %v271
    %v274 = vmul.u32 %v267, %v258
    %v275 = vadd.s32 %v270, %v272
    %vm276 = vc.u32 %v270, %v272
    %v277 = vadd.s32 %v273, 1
    %v278 = vsel %vm276, %v277, %v273
    %v279 = vadd.s32 %v274, %v278
    %v280 = vadd.s32 %v279, 536870912
    %v281 = vshrl.u32 %v280, 30
    %v282 = vshll.u32 %v281, 30
    %v283 = vsub.s32 %v279, %v282
    %vm284 = vcmp.lt.s32.totalorder %v283, 0
    %v285 = vsub.s32 0, %v283
    %v286 = vsel %vm284, %v285, %v283
    %v287 = vclz %v286
    %v288 = vsub.s32 %v287, 2
    %vm289 = vcmp.gt.s32.totalorder 0, %v288
    %v290 = vsel %vm289, 0, %v288
    %v291 = vsub.s32 32, %v290
    %v292 = vshll.u32 %v283, %v290
    %v293 = vshrl.u32 %v275, %v291
    %v294 = vor.u32 %v292, %v293
    %v295 = vsub.s32 4294967266, %v290
    %v296 = vadd.s32 %v295, 127
    %v297 = vshll.u32 %v296, 23
    %v298 = vor.u32 4788187, %v297
    %v299 = vand.u32 2147483647, %v298
    %v301 = vcvt.s32.f32 %v294
    %v302 = vmul.f32 %v301, %v299
    %v303 = vxor.u32 %v302, 2147483648
    %v304 = vsel %vm221, %v303, %v302
    %v305 = vsub.s32 4, %v281
    %v306 = vsel %vm221, %v305, %v281
    %v307 = vsel %vm220, %v115, %v304
    %v308 = vsel %vm220, 0, %v306
    %v309 = vcosq.f32.pop %v307
    %v310 = vsinq.f32.pop %v307
    %vm311 = vweird.f32 %v115
    %v312 = vand.u32 %v308, 3
    %vm313 = vcmp.lt.s32.totalorder %v312, 2
    %vm314 = vcmp.eq.s32.totalorder %v312, 0
    %v315 = vxor.u32 %v310, 2147483648
    %v316 = vsel %vm314, %v309, %v315
    %vm317 = vcmp.eq.s32.totalorder %v312, 2
    %v318 = vxor.u32 %v309, 2147483648
    %v319 = vsel %vm317, %v318, %v310
    %v320 = vsel %vm313, %v316, %v319
    %v321 = vsel %vm311, nan, %v320
    %v322 = vmul.f32 %v106, %v218
    %v323 = vmul.f32 %v113, %v321
    %v324 = vld [vmem:[%s1] sm:$0x3]
    %v325 = vld [vmem:[%s2] sm:$0x3]
    %v326 = vmul.f32 %v325, 0.5
    %v327 = vmul.f32 %v326, 1.442695
    %v328 = vpow.pop %v327
    %v331 = vcombine.low %v322, %v323
    %v333 = vunpack.c.l.s4 1966171168
    %v334 = vunpack.c.0.s8 %v333
    %v335 = vlaneseq
    %v336 = vshrl.u32 %v335, 7
    %v337 = vsub.s32 %v334, %v336
    %v338 = vrot.slane %v331, %v337
    %v340 = vunpack.c.l.s4 1966171168
    %v341 = vunpack.c.0.s8 %v340
    %v342 = vlaneseq
    %v343 = vshrl.u32 %v342, 7
    %v344 = vsub.s32 %v341, %v343
    %v345 = vrot.slane %v338, %v344
    %v347 = vmul.f32 %v328, %v345
    %v348 = vadd.f32 %v324, %v347
    %v349 = vlaneseq
    %vm350 = vcmp.ge.s32.totalorder %v349, 0
    %vm351 = vcmp.lt.s32.totalorder %v349, 256
    %vm352 = vmand %vm350, %vm351
    %353 = vst.msk [vmem:[#allocation4] sm:$0x3] %vm352, %v348
    // Predicated region
    $region10: #{tpu_custom_call.1} parent=1 // pred_check
      _
    $region11: #{tpu_custom_call.1} parent=1 // pred_check_branch
      %355 = sbr.rel (0) target = $region13
    $region12: #{tpu_custom_call.1} parent=1 // pred_region
      %s357 = ssub.s32 32, 32
      %358 = vsyncadd [#allocation5], %s357
      %s360 = sshll.u32 [#allocation4], 4
      %s361 = int_to_ptr.vmem [resolvable:$true] %s360
      %363 = dma.vmem_to_hbm [thread:$0]  %s361, 32, %s3, [#allocation5]
    $region13: #{tpu_custom_call.1} parent=1 // pred_fallthru
      _
    // Predicated region
    $region14: #{tpu_custom_call.1} parent=1 // pred_check
      _
    $region15: #{tpu_custom_call.1} parent=1 // pred_check_branch
      %365 = sbr.rel (0) target = $region17
    $region16: #{tpu_custom_call.1} parent=1 // pred_region
      %366 = dma.done [#allocation5], 32
    $region17: #{tpu_custom_call.1} parent=1 // pred_fallthru
      _
    %367 = vsyncpa [#allocation5], 1

</llo_original>
